<compile_context>
chip_gen: v7x
topology: tpu7x:2x2x1
jax: 0.10.0
libtpu: 0.0.40
codegen_flags: <defaults>
</compile_context>

<pallas_src>
import jax
import jax.numpy as jnp
from jax.experimental import pallas as pl
from jax.experimental.pallas import tpu as pltpu

EPS = 1e-5
LANES = 128
N_CONT = 3
N_DIS = 2
N_HEAD = N_CONT + N_DIS  # 5


def _bn_train(h, gamma, beta):
    """PyTorch BatchNorm1d training mode (batch mean, biased var), two-pass."""
    mean = jnp.mean(h, axis=0, keepdims=True)
    d = h - mean
    var = jnp.mean(d * d, axis=0, keepdims=True)
    scale = gamma * jax.lax.rsqrt(var + EPS)
    return d * scale + beta


def make_actor_kernel(batch):
    def actor_kernel(data_ref, w_ref, out_ref):
        data = data_ref[...]                              # (8 + 2B, 128) f32
        vec = data[0:8, :]                                # param rows
        x = data[8:8 + batch, :]                          # (B, 128) state, zero-padded lanes
        u = data[8 + batch:8 + 2 * batch, :]              # (B, 128) uniforms at lanes 3:5

        g1, be1 = vec[0:1, :], vec[1:2, :]
        g2, be2 = vec[2:3, :], vec[3:4, :]
        g3, be3 = vec[4:5, :], vec[5:6, :]
        bd = vec[6:7, :]                                  # zeros except lanes 3:5

        w = w_ref[...]                                    # (384, 128) bf16
        w1 = w[0:128, :]                                  # rows >= input_dims are zero
        w2 = w[128:256, :]                                # lanes >= 64 are zero
        wh = w[256:384, :]                                # rows >= 64 / lanes >= 5 are zero

        # fc1 -> bn1 -> relu   (fc1 bias cancelled by BN mean-subtract)
        h1 = jnp.dot(x.astype(jnp.bfloat16), w1, preferred_element_type=jnp.float32)
        h1 = jnp.maximum(_bn_train(h1, g1, be1), 0.0)

        # fc2 -> bn2 -> relu   (dead lanes 64:128 stay exactly 0)
        h2 = jnp.dot(h1.astype(jnp.bfloat16), w2, preferred_element_type=jnp.float32)
        h2 = jnp.maximum(_bn_train(h2, g2, be2), 0.0)

        # Fused heads: cols 0:3 = cont_act, cols 3:5 = dis_act (+ its bias).
        heads = jnp.dot(h2.astype(jnp.bfloat16), wh, preferred_element_type=jnp.float32) + bd

        # Continuous path: bn3 -> tanh (only cols 0:3 kept; padded lanes harmless).
        cont = jnp.tanh(_bn_train(heads, g3, be3))

        # Discrete path: sigmoid -> bernoulli via precomputed uniforms.
        prob = jax.nn.sigmoid(heads)
        samp = (u < prob).astype(jnp.float32)

        # Single lane-dense store; wrapper slices [:, :5].
        col = jax.lax.broadcasted_iota(jnp.int32, heads.shape, 1)
        out_ref[...] = jnp.where(col < N_CONT, cont, samp)

    return actor_kernel


@jax.jit
def actor_forward(state, u, w_slab, vec):
    B, input_dims = state.shape

    # Build the single f32 data slab: [vec(8) | state(B) | uniforms(B)] x 128 lanes.
    state_rows = jnp.zeros((B, LANES), jnp.float32).at[:, :input_dims].set(state)
    u_rows = jnp.full((B, LANES), 2.0, jnp.float32).at[:, N_CONT:N_HEAD].set(u)
    data = jnp.concatenate([vec, state_rows, u_rows], axis=0)

    flops = 2 * B * LANES * LANES * 3
    bytes_accessed = data.size * 4 + w_slab.size * 2 + B * LANES * 4
    cost = pl.CostEstimate(flops=flops,
                           transcendentals=3 * B * LANES,
                           bytes_accessed=bytes_accessed)

    vspec = pl.BlockSpec(memory_space=pltpu.MemorySpace.VMEM)
    out = pl.pallas_call(
        make_actor_kernel(B),
        out_shape=jax.ShapeDtypeStruct((B, LANES), jnp.float32),
        in_specs=[vspec, vspec],
        out_specs=pl.BlockSpec(memory_space=pltpu.MemorySpace.VMEM),
        cost_estimate=cost,
    )(data, w_slab)
    return out[:, :N_HEAD]


def init_params(key, input_dims):
    """Deterministic parameter init mimicking the PyTorch __init__."""
    ks = jax.random.split(key, 5)

    def kaiming_uniform(k, fan_in, fan_out):          # kaiming_uniform_(relu, fan_in)
        bound = jnp.sqrt(6.0 / fan_in)
        return jax.random.uniform(k, (fan_in, fan_out), jnp.float32, -bound, bound)

    def xavier_normal(k, fan_in, fan_out):
        std = jnp.sqrt(2.0 / (fan_in + fan_out))
        return std * jax.random.normal(k, (fan_in, fan_out), jnp.float32)

    p = {}
    p["w1"] = kaiming_uniform(ks[0], input_dims, 128)   # fc1 (bias dropped: BN cancels)
    p["g1"] = jnp.ones((128,), jnp.float32)
    p["be1"] = jnp.zeros((128,), jnp.float32)
    p["w2"] = kaiming_uniform(ks[1], 128, 64)           # fc2 (bias dropped: BN cancels)
    p["g2"] = jnp.ones((64,), jnp.float32)
    p["be2"] = jnp.zeros((64,), jnp.float32)
    p["wc"] = xavier_normal(ks[2], 64, N_CONT)          # cont_act (bias dropped: BN cancels)
    p["g3"] = jnp.ones((N_CONT,), jnp.float32)
    p["be3"] = jnp.zeros((N_CONT,), jnp.float32)
    p["wd"] = xavier_normal(ks[3], 64, N_DIS)           # dis_act
    bound = 1.0 / jnp.sqrt(64.0)
    p["bd"] = jax.random.uniform(ks[4], (N_DIS,), jnp.float32, -bound, bound)
    return p


def pack_params(p, input_dims):
    """Pack all parameters into one bf16 weight slab + one f32 vector slab."""
    # (384, 128) bf16 weight slab; all padding is exact zeros.
    w1_pad = jnp.zeros((LANES, LANES), jnp.float32).at[:input_dims, :].set(p["w1"])
    w2_pad = jnp.zeros((LANES, LANES), jnp.float32).at[:, :64].set(p["w2"])
    wh = jnp.concatenate([p["wc"], p["wd"]], axis=1)                       # (64, 5)
    wh_pad = jnp.zeros((LANES, LANES), jnp.float32).at[:64, :N_HEAD].set(wh)
    w_slab = jnp.concatenate([w1_pad, w2_pad, wh_pad], axis=0).astype(jnp.bfloat16)

    def row(vals, fill=0.0):
        v = jnp.asarray(vals, jnp.float32).reshape(-1)
        return jnp.full((LANES,), fill, jnp.float32).at[:v.shape[0]].set(v)

    vec = jnp.stack([
        row(p["g1"]), row(p["be1"]),
        row(p["g2"], fill=1.0), row(p["be2"]),
        row(p["g3"], fill=1.0), row(p["be3"]),
        jnp.zeros((LANES,), jnp.float32).at[N_CONT:N_HEAD].set(p["bd"]),
        jnp.zeros((LANES,), jnp.float32),
    ], axis=0)                                                             # (8, 128) f32
    return w_slab, vec


if __name__ == "__main__":
    key = jax.random.PRNGKey(0)
    B, input_dims = 8, 32

    k_state, k_params, k_u = jax.random.split(key, 3)
    state = jax.random.normal(k_state, (B, input_dims), jnp.float32)
    params = init_params(k_params, input_dims)
    w_slab, vec = pack_params(params, input_dims)

    # TODO(synk): torch.bernoulli's RNG stream can't be reproduced; uniforms
    # come from jax.random in the wrapper (distributionally equivalent).
    u = jax.random.uniform(k_u, (B, N_DIS), jnp.float32)

    out = actor_forward(state, u, w_slab, vec)
    jax.block_until_ready(out)

    assert out.shape == (B, N_HEAD)
    assert bool(jnp.all(jnp.isfinite(out)))
    # continuous part in [-1, 1], discrete part in {0, 1}
    assert bool(jnp.all(jnp.abs(out[:, :N_CONT]) <= 1.0))
    assert bool(jnp.all((out[:, N_CONT:] == 0.0) | (out[:, N_CONT:] == 1.0)))
    print("KERNEL_OK")
</pallas_src>

<mosaic_0001>
module attributes {stable_mosaic.version = 11 : i64} {
  func.func @actor_kernel(%arg0: memref<24x128xf32, #tpu.memory_space<vmem>>, %arg1: memref<384x128xbf16, #tpu.memory_space<vmem>>, %arg2: memref<8x128xf32, #tpu.memory_space<vmem>>) attributes {dimension_semantics = [], scalar_prefetch = 0 : i64, scratch_operands = 0 : i64, tpu.core_type = #tpu.core_type<tc>} {
    %c0 = arith.constant 0 : index
    %c0_0 = arith.constant 0 : index
    %0 = vector.load %arg0[%c0, %c0_0] : memref<24x128xf32, #tpu.memory_space<vmem>>, vector<24x128xf32>
    %1 = vector.extract_strided_slice %0 {offsets = [0, 0], sizes = [8, 128], strides = [1, 1]} : vector<24x128xf32> to vector<8x128xf32>
    %2 = vector.extract_strided_slice %0 {offsets = [8, 0], sizes = [8, 128], strides = [1, 1]} : vector<24x128xf32> to vector<8x128xf32>
    %3 = vector.extract_strided_slice %0 {offsets = [16, 0], sizes = [8, 128], strides = [1, 1]} : vector<24x128xf32> to vector<8x128xf32>
    %4 = vector.extract_strided_slice %1 {offsets = [0, 0], sizes = [1, 128], strides = [1, 1]} : vector<8x128xf32> to vector<1x128xf32>
    %5 = vector.extract_strided_slice %1 {offsets = [1, 0], sizes = [1, 128], strides = [1, 1]} : vector<8x128xf32> to vector<1x128xf32>
    %6 = vector.extract_strided_slice %1 {offsets = [2, 0], sizes = [1, 128], strides = [1, 1]} : vector<8x128xf32> to vector<1x128xf32>
    %7 = vector.extract_strided_slice %1 {offsets = [3, 0], sizes = [1, 128], strides = [1, 1]} : vector<8x128xf32> to vector<1x128xf32>
    %8 = vector.extract_strided_slice %1 {offsets = [4, 0], sizes = [1, 128], strides = [1, 1]} : vector<8x128xf32> to vector<1x128xf32>
    %9 = vector.extract_strided_slice %1 {offsets = [5, 0], sizes = [1, 128], strides = [1, 1]} : vector<8x128xf32> to vector<1x128xf32>
    %10 = vector.extract_strided_slice %1 {offsets = [6, 0], sizes = [1, 128], strides = [1, 1]} : vector<8x128xf32> to vector<1x128xf32>
    %c0_1 = arith.constant 0 : index
    %c0_2 = arith.constant 0 : index
    %11 = vector.load %arg1[%c0_1, %c0_2] : memref<384x128xbf16, #tpu.memory_space<vmem>>, vector<384x128xbf16>
    %12 = vector.extract_strided_slice %11 {offsets = [0, 0], sizes = [128, 128], strides = [1, 1]} : vector<384x128xbf16> to vector<128x128xbf16>
    %13 = vector.extract_strided_slice %11 {offsets = [128, 0], sizes = [128, 128], strides = [1, 1]} : vector<384x128xbf16> to vector<128x128xbf16>
    %14 = vector.extract_strided_slice %11 {offsets = [256, 0], sizes = [128, 128], strides = [1, 1]} : vector<384x128xbf16> to vector<128x128xbf16>
    %15 = arith.truncf %2 : vector<8x128xf32> to vector<8x128xbf16>
    %cst = arith.constant dense<0.000000e+00> : vector<8x128xf32>
    %16 = tpu.matmul %15, %12, %cst {dimension_numbers = #tpu.dot_dimension_numbers<[1], [0], [0], [1], [0, 0, 1, 1], [], []>} : vector<8x128xbf16>, vector<128x128xbf16>, vector<8x128xf32> -> vector<8x128xf32>
    %cst_3 = arith.constant dense<0.000000e+00> : vector<128xf32>
    %17 = vector.multi_reduction <add>, %16, %cst_3 [0] : vector<8x128xf32> to vector<128xf32>
    %18 = vector.shape_cast %17 : vector<128xf32> to vector<1x128xf32>
    %cst_4 = arith.constant 8.000000e+00 : f32
    %19 = vector.broadcast %cst_4 : f32 to vector<1x128xf32>
    %20 = arith.divf %18, %19 : vector<1x128xf32>
    %21 = vector.broadcast %20 : vector<1x128xf32> to vector<8x128xf32>
    %22 = arith.subf %16, %21 : vector<8x128xf32>
    %23 = arith.mulf %22, %22 : vector<8x128xf32>
    %cst_5 = arith.constant dense<0.000000e+00> : vector<128xf32>
    %24 = vector.multi_reduction <add>, %23, %cst_5 [0] : vector<8x128xf32> to vector<128xf32>
    %25 = vector.shape_cast %24 : vector<128xf32> to vector<1x128xf32>
    %cst_6 = arith.constant 8.000000e+00 : f32
    %26 = vector.broadcast %cst_6 : f32 to vector<1x128xf32>
    %27 = arith.divf %25, %26 : vector<1x128xf32>
    %cst_7 = arith.constant 9.99999974E-6 : f32
    %28 = vector.broadcast %cst_7 : f32 to vector<1x128xf32>
    %29 = arith.addf %27, %28 : vector<1x128xf32>
    %30 = math.rsqrt %29 : vector<1x128xf32>
    %31 = arith.mulf %4, %30 : vector<1x128xf32>
    %32 = vector.broadcast %31 : vector<1x128xf32> to vector<8x128xf32>
    %33 = arith.mulf %22, %32 : vector<8x128xf32>
    %34 = vector.broadcast %5 : vector<1x128xf32> to vector<8x128xf32>
    %35 = arith.addf %33, %34 : vector<8x128xf32>
    %cst_8 = arith.constant 0.000000e+00 : f32
    %36 = vector.broadcast %cst_8 : f32 to vector<8x128xf32>
    %37 = arith.maximumf %35, %36 : vector<8x128xf32>
    %38 = arith.truncf %37 : vector<8x128xf32> to vector<8x128xbf16>
    %cst_9 = arith.constant dense<0.000000e+00> : vector<8x128xf32>
    %39 = tpu.matmul %38, %13, %cst_9 {dimension_numbers = #tpu.dot_dimension_numbers<[1], [0], [0], [1], [0, 0, 1, 1], [], []>} : vector<8x128xbf16>, vector<128x128xbf16>, vector<8x128xf32> -> vector<8x128xf32>
    %cst_10 = arith.constant dense<0.000000e+00> : vector<128xf32>
    %40 = vector.multi_reduction <add>, %39, %cst_10 [0] : vector<8x128xf32> to vector<128xf32>
    %41 = vector.shape_cast %40 : vector<128xf32> to vector<1x128xf32>
    %cst_11 = arith.constant 8.000000e+00 : f32
    %42 = vector.broadcast %cst_11 : f32 to vector<1x128xf32>
    %43 = arith.divf %41, %42 : vector<1x128xf32>
    %44 = vector.broadcast %43 : vector<1x128xf32> to vector<8x128xf32>
    %45 = arith.subf %39, %44 : vector<8x128xf32>
    %46 = arith.mulf %45, %45 : vector<8x128xf32>
    %cst_12 = arith.constant dense<0.000000e+00> : vector<128xf32>
    %47 = vector.multi_reduction <add>, %46, %cst_12 [0] : vector<8x128xf32> to vector<128xf32>
    %48 = vector.shape_cast %47 : vector<128xf32> to vector<1x128xf32>
    %cst_13 = arith.constant 8.000000e+00 : f32
    %49 = vector.broadcast %cst_13 : f32 to vector<1x128xf32>
    %50 = arith.divf %48, %49 : vector<1x128xf32>
    %cst_14 = arith.constant 9.99999974E-6 : f32
    %51 = vector.broadcast %cst_14 : f32 to vector<1x128xf32>
    %52 = arith.addf %50, %51 : vector<1x128xf32>
    %53 = math.rsqrt %52 : vector<1x128xf32>
    %54 = arith.mulf %6, %53 : vector<1x128xf32>
    %55 = vector.broadcast %54 : vector<1x128xf32> to vector<8x128xf32>
    %56 = arith.mulf %45, %55 : vector<8x128xf32>
    %57 = vector.broadcast %7 : vector<1x128xf32> to vector<8x128xf32>
    %58 = arith.addf %56, %57 : vector<8x128xf32>
    %cst_15 = arith.constant 0.000000e+00 : f32
    %59 = vector.broadcast %cst_15 : f32 to vector<8x128xf32>
    %60 = arith.maximumf %58, %59 : vector<8x128xf32>
    %61 = arith.truncf %60 : vector<8x128xf32> to vector<8x128xbf16>
    %cst_16 = arith.constant dense<0.000000e+00> : vector<8x128xf32>
    %62 = tpu.matmul %61, %14, %cst_16 {dimension_numbers = #tpu.dot_dimension_numbers<[1], [0], [0], [1], [0, 0, 1, 1], [], []>} : vector<8x128xbf16>, vector<128x128xbf16>, vector<8x128xf32> -> vector<8x128xf32>
    %63 = vector.broadcast %10 : vector<1x128xf32> to vector<8x128xf32>
    %64 = arith.addf %62, %63 : vector<8x128xf32>
    %cst_17 = arith.constant dense<0.000000e+00> : vector<128xf32>
    %65 = vector.multi_reduction <add>, %64, %cst_17 [0] : vector<8x128xf32> to vector<128xf32>
    %66 = vector.shape_cast %65 : vector<128xf32> to vector<1x128xf32>
    %cst_18 = arith.constant 8.000000e+00 : f32
    %67 = vector.broadcast %cst_18 : f32 to vector<1x128xf32>
    %68 = arith.divf %66, %67 : vector<1x128xf32>
    %69 = vector.broadcast %68 : vector<1x128xf32> to vector<8x128xf32>
    %70 = arith.subf %64, %69 : vector<8x128xf32>
    %71 = arith.mulf %70, %70 : vector<8x128xf32>
    %cst_19 = arith.constant dense<0.000000e+00> : vector<128xf32>
    %72 = vector.multi_reduction <add>, %71, %cst_19 [0] : vector<8x128xf32> to vector<128xf32>
    %73 = vector.shape_cast %72 : vector<128xf32> to vector<1x128xf32>
    %cst_20 = arith.constant 8.000000e+00 : f32
    %74 = vector.broadcast %cst_20 : f32 to vector<1x128xf32>
    %75 = arith.divf %73, %74 : vector<1x128xf32>
    %cst_21 = arith.constant 9.99999974E-6 : f32
    %76 = vector.broadcast %cst_21 : f32 to vector<1x128xf32>
    %77 = arith.addf %75, %76 : vector<1x128xf32>
    %78 = math.rsqrt %77 : vector<1x128xf32>
    %79 = arith.mulf %8, %78 : vector<1x128xf32>
    %80 = vector.broadcast %79 : vector<1x128xf32> to vector<8x128xf32>
    %81 = arith.mulf %70, %80 : vector<8x128xf32>
    %82 = vector.broadcast %9 : vector<1x128xf32> to vector<8x128xf32>
    %83 = arith.addf %81, %82 : vector<8x128xf32>
    %84 = math.tanh %83 : vector<8x128xf32>
    %85 = arith.negf %64 : vector<8x128xf32>
    %86 = math.exp %85 : vector<8x128xf32>
    %cst_22 = arith.constant 1.000000e+00 : f32
    %87 = vector.broadcast %cst_22 : f32 to vector<8x128xf32>
    %88 = arith.addf %87, %86 : vector<8x128xf32>
    %89 = arith.divf %87, %88 : vector<8x128xf32>
    %90 = arith.cmpf olt, %3, %89 : vector<8x128xf32>
    %91 = arith.extui %90 : vector<8x128xi1> to vector<8x128xi32>
    %92 = arith.sitofp %91 : vector<8x128xi32> to vector<8x128xf32>
    %93 = tpu.iota {dimensions = array<i32: 1>} : vector<8x128xi32>
    %c3_i32 = arith.constant 3 : i32
    %94 = vector.broadcast %c3_i32 : i32 to vector<8x128xi32>
    %95 = arith.cmpi slt, %93, %94 : vector<8x128xi32>
    %96 = arith.select %95, %84, %92 : vector<8x128xi1>, vector<8x128xf32>
    %c0_23 = arith.constant 0 : index
    %c0_24 = arith.constant 0 : index
    %97 = vector.load %arg2[%c0_23, %c0_24] : memref<8x128xf32, #tpu.memory_space<vmem>>, vector<8x128xf32>
    tpu.vector_store %arg2[%c0_23, %c0_24], %96 {strides = array<i32>} : memref<8x128xf32, #tpu.memory_space<vmem>>, vector<8x128xf32>,
    return
  }
}

</mosaic_0001>

<llo_original>
// kernel: actor_forward.1
$region0: #{actor_forward.1}
  #allocation0 [shape = 'u32[]', space=smem, size = 0x4, offset = 0x4, fixed_abs, tag = 'smem constant byte address 0x4 - core index']
  #allocation1 [shape = 'u32[144,128]{1,0:T(1,128)}', space=vmem, size = 0x12000, scoped, tag = 'internal scratch']
  %s0 = inlined_call_operand.vmem [shape: f32[24,128], index: 0, kind: input, shape index: {}]
  %s1 = inlined_call_operand.hbm [shape: bf16[384,128], index: 1, kind: input, shape index: {}]
  %s2 = inlined_call_operand.hbm [shape: f32[8,128], index: 2, kind: output, shape index: {}]
  %s3 = sld [smem:[#allocation0]]
  $region22: #{actor_forward.1} parent=0
    _
  %s5 = ssub.s32 1, %s3
  %s6 = scalar_select 0, %s5, %s3
  $region1: #{actor_forward.1} parent=0
    #allocation2 [shape = 'u8[98304]{0}', space=vmem, size = 0x18000, scoped, tag = 'input window, operand 1, single buffered']
    #allocation3 [shape = 's32[1]{0}', space=sflag, size = 0x4, scoped, tag = 'scoped memory for actor_forward.1']
    #allocation4 [shape = 's32[1]{0}', space=sflag, size = 0x4, scoped, tag = 'scoped memory for actor_forward.1']
    #allocation5 [shape = 'u8[4096]{0}', space=vmem, size = 0x1000, scoped, tag = 'output window, operand 0, single buffered']
    %7 = vsyncpa [#allocation3], 0
    %8 = vsyncpa [#allocation4], 0
    // Predicated region
    $region2: #{actor_forward.1} parent=1 // pred_check
      _
    $region3: #{actor_forward.1} parent=1 // pred_check_branch
      %10 = sbr.rel (0) target = $region5
    $region4: #{actor_forward.1} parent=1 // pred_region
      _
    $region5: #{actor_forward.1} parent=1 // pred_fallthru
      _
    // Predicated region
    $region6: #{actor_forward.1} parent=1 // pred_check
      _
    $region7: #{actor_forward.1} parent=1 // pred_check_branch
      %12 = sbr.rel (0) target = $region9
    $region8: #{actor_forward.1} parent=1 // pred_region
      %s14 = ssub.s32 3072, 3072
      %15 = vsyncadd [#allocation3], %s14
      %s16 = sshll.u32 [#allocation2], 4
      %s17 = int_to_ptr.vmem [resolvable:$true] %s16
      %22 = dma.hbm_to_vmem [thread:$0]  %s1, 3072, %s17, [#allocation3], 64, 64, 4
    $region9: #{actor_forward.1} parent=1 // pred_fallthru
      _
    // Predicated region
    $region10: #{actor_forward.1} parent=1 // pred_check
      _
    $region11: #{actor_forward.1} parent=1 // pred_check_branch
      %24 = sbr.rel (0) target = $region13
    $region12: #{actor_forward.1} parent=1 // pred_region
      %25 = dma.done [#allocation3], 3072
    $region13: #{actor_forward.1} parent=1 // pred_fallthru
      _
    %v27 = vld [vmem:[%s0] sm:$0xff]
    %v28 = vld [vmem:[%s0 + $0x8] sm:$0xff]
    %v29 = vld [vmem:[%s0 + $0x10] sm:$0xff]
    %v30 = vld [vmem:[#allocation2] sm:$0xf]
    %v31 = vld [vmem:[#allocation2 + $0x4] sm:$0xf]
    %v32 = vld [vmem:[#allocation2 + $0x8] sm:$0xf]
    %v33 = vld [vmem:[#allocation2 + $0xc] sm:$0xf]
    %v34 = vld [vmem:[#allocation2 + $0x10] sm:$0xf]
    %v35 = vld [vmem:[#allocation2 + $0x14] sm:$0xf]
    %v36 = vld [vmem:[#allocation2 + $0x18] sm:$0xf]
    %v37 = vld [vmem:[#allocation2 + $0x1c] sm:$0xf]
    %v38 = vld [vmem:[#allocation2 + $0x20] sm:$0xf]
    %v39 = vld [vmem:[#allocation2 + $0x24] sm:$0xf]
    %v40 = vld [vmem:[#allocation2 + $0x28] sm:$0xf]
    %v41 = vld [vmem:[#allocation2 + $0x2c] sm:$0xf]
    %v42 = vld [vmem:[#allocation2 + $0x30] sm:$0xf]
    %v43 = vld [vmem:[#allocation2 + $0x34] sm:$0xf]
    %v44 = vld [vmem:[#allocation2 + $0x38] sm:$0xf]
    %v45 = vld [vmem:[#allocation2 + $0x3c] sm:$0xf]
    %v46 = vld [vmem:[#allocation2 + $0x40] sm:$0xf]
    %v47 = vld [vmem:[#allocation2 + $0x44] sm:$0xf]
    %v48 = vld [vmem:[#allocation2 + $0x48] sm:$0xf]
    %v49 = vld [vmem:[#allocation2 + $0x4c] sm:$0xf]
    %v50 = vld [vmem:[#allocation2 + $0x50] sm:$0xf]
    %v51 = vld [vmem:[#allocation2 + $0x54] sm:$0xf]
    %v52 = vld [vmem:[#allocation2 + $0x58] sm:$0xf]
    %v53 = vld [vmem:[#allocation2 + $0x5c] sm:$0xf]
    %v54 = vld [vmem:[#allocation2 + $0x60] sm:$0xf]
    %v55 = vld [vmem:[#allocation2 + $0x64] sm:$0xf]
    %v56 = vld [vmem:[#allocation2 + $0x68] sm:$0xf]
    %v57 = vld [vmem:[#allocation2 + $0x6c] sm:$0xf]
    %v58 = vld [vmem:[#allocation2 + $0x70] sm:$0xf]
    %v59 = vld [vmem:[#allocation2 + $0x74] sm:$0xf]
    %v60 = vld [vmem:[#allocation2 + $0x78] sm:$0xf]
    %v61 = vld [vmem:[#allocation2 + $0x7c] sm:$0xf]
    %v62 = vld [vmem:[#allocation2 + $0x80] sm:$0xf]
    %v63 = vld [vmem:[#allocation2 + $0x84] sm:$0xf]
    %v64 = vld [vmem:[#allocation2 + $0x88] sm:$0xf]
    %v65 = vld [vmem:[#allocation2 + $0x8c] sm:$0xf]
    %v66 = vld [vmem:[#allocation2 + $0x90] sm:$0xf]
    %v67 = vld [vmem:[#allocation2 + $0x94] sm:$0xf]
    %v68 = vld [vmem:[#allocation2 + $0x98] sm:$0xf]
    %v69 = vld [vmem:[#allocation2 + $0x9c] sm:$0xf]
    %v70 = vld [vmem:[#allocation2 + $0xa0] sm:$0xf]
    %v71 = vld [vmem:[#allocation2 + $0xa4] sm:$0xf]
    %v72 = vld [vmem:[#allocation2 + $0xa8] sm:$0xf]
    %v73 = vld [vmem:[#allocation2 + $0xac] sm:$0xf]
    %v74 = vld [vmem:[#allocation2 + $0xb0] sm:$0xf]
    %v75 = vld [vmem:[#allocation2 + $0xb4] sm:$0xf]
    %v76 = vld [vmem:[#allocation2 + $0xb8] sm:$0xf]
    %v77 = vld [vmem:[#allocation2 + $0xbc] sm:$0xf]
    %v78 = vpack.c.bf16 %v28, %v28
    %v95 = vunpack.c.l.b16 %v30
    %v96 = vunpack.c.l.b16 %v31
    %v97 = vunpack.c.l.b16 %v32
    %v98 = vunpack.c.l.b16 %v33
    %v99 = vunpack.c.l.b16 %v34
    %v100 = vunpack.c.l.b16 %v35
    %v101 = vunpack.c.l.b16 %v36
    %v102 = vunpack.c.l.b16 %v37
    %v103 = vunpack.c.l.b16 %v38
    %v104 = vunpack.c.l.b16 %v39
    %v105 = vunpack.c.l.b16 %v40
    %v106 = vunpack.c.l.b16 %v41
    %v107 = vunpack.c.l.b16 %v42
    %v108 = vunpack.c.l.b16 %v43
    %v109 = vunpack.c.l.b16 %v44
    %v110 = vunpack.c.l.b16 %v45
    %v111 = vpack.c.b16 %v96, %v95
    %v112 = vpack.c.b16 %v98, %v97
    %v113 = vpack.c.b16 %v100, %v99
    %v114 = vpack.c.b16 %v102, %v101
    %v115 = vpack.c.b16 %v104, %v103
    %v116 = vpack.c.b16 %v106, %v105
    %v117 = vpack.c.b16 %v108, %v107
    %v118 = vpack.c.b16 %v110, %v109
    %127 = vmatprep.subr.bf16.mxu0 0
    %128 = vmatpush1.bf16.msra.mxu0 %v111
    %129 = vmatprep.subr.bf16.mxu0 0
    %130 = vmatpush1.bf16.msra.mxu0 %v112
    %131 = vmatprep.subr.bf16.mxu0 0
    %132 = vmatpush1.bf16.msra.mxu0 %v113
    %133 = vmatprep.subr.bf16.mxu0 0
    %134 = vmatpush1.bf16.msra.mxu0 %v114
    %135 = vmatprep.subr.bf16.mxu0 0
    %136 = vmatpush1.bf16.msra.mxu0 %v115
    %137 = vmatprep.subr.bf16.mxu0 0
    %138 = vmatpush1.bf16.msra.mxu0 %v116
    %139 = vmatprep.subr.bf16.mxu0 0
    %140 = vmatpush1.bf16.msra.mxu0 %v117
    %141 = vmatprep.subr.bf16.mxu0 0
    %142 = vmatpush1.bf16.msra.mxu0 %v118
    %143 = vmatprep.subr.bf16.mxu0 0
    %144 = vmatpush1.bf16.msra.mxu0 0
    %145 = vmatprep.subr.bf16.mxu0 0
    %146 = vmatpush1.bf16.msra.mxu0 0
    %147 = vmatprep.subr.bf16.mxu0 0
    %148 = vmatpush1.bf16.msra.mxu0 0
    %149 = vmatprep.subr.bf16.mxu0 0
    %150 = vmatpush1.bf16.msra.mxu0 0
    %151 = vmatprep.subr.bf16.mxu0 0
    %152 = vmatpush1.bf16.msra.mxu0 0
    %153 = vmatprep.subr.bf16.mxu0 0
    %154 = vmatpush1.bf16.msra.mxu0 0
    %155 = vmatprep.subr.bf16.mxu0 0
    %156 = vmatpush1.bf16.msra.mxu0 0
    %157 = vmatprep.subr.bf16.mxu0 0
    %158 = vmatpush1.bf16.msra.mxu0 0
    %159 = vmatprep.mubr.bf16.mxu0 0
    %160 = vmatmul.mubr.bf16.gmra.mrb[0].mxu0 %v78
    %v161 = vpop.f32.mrb[0].mxu0
    %v162 = vadd.f32 0.0, %v161
    %v163 = vpop.f32.mrb[0].mxu0
    %v164 = vpop.f32.mrb[0].mxu0
    %v165 = vpop.f32.mrb[0].mxu0
    %166 = vdwg.mxu0
    %v167 = vrot.slane %v162, 4
    %v168 = vadd.f32 %v162, %v167
    %v169 = vrot.slane %v168, 2
    %v170 = vadd.f32 %v168, %v169
    %v171 = vrot.slane %v170, 1
    %v172 = vadd.f32 %v170, %v171
    %v173 = vrcp.pop 8.0
    %v174 = vmul.f32 %v172, %v173
    %v175 = vsub.f32 %v162, %v174
    %v176 = vmul.f32 %v175, %v175
    %v177 = vrot.slane %v176, 4
    %v178 = vadd.f32 %v176, %v177
    %v179 = vrot.slane %v178, 2
    %v180 = vadd.f32 %v178, %v179
    %v181 = vrot.slane %v180, 1
    %v182 = vadd.f32 %v180, %v181
    %v183 = vmul.f32 %v182, %v173
    %v184 = vadd.f32 %v183, 1e-05
    %v185 = vrsqrt.pop %v184
    %v186 = vmul.f32 %v27, %v185
    %v187 = vlaneseq
    %v188 = vshrl.u32 %v187, 7
    %v189 = vsub.s32 0, %v188
    %v190 = vrot.slane %v186, %v189
    %v191 = vmul.f32 %v175, %v190
    %v192 = vlaneseq
    %v193 = vshrl.u32 %v192, 7
    %v194 = vsub.s32 1, %v193
    %v195 = vrot.slane %v27, %v194
    %v196 = vadd.f32 %v191, %v195
    %v197 = vmax.f32 %v196, 0.0
    %v198 = vpack.c.bf16 %v197, %v197
    %v215 = vunpack.c.l.b16 %v46
    %v216 = vunpack.c.l.b16 %v47
    %v217 = vunpack.c.l.b16 %v48
    %v218 = vunpack.c.l.b16 %v49
    %v219 = vunpack.c.l.b16 %v50
    %v220 = vunpack.c.l.b16 %v51
    %v221 = vunpack.c.l.b16 %v52
    %v222 = vunpack.c.l.b16 %v53
    %v223 = vunpack.c.l.b16 %v54
    %v224 = vunpack.c.l.b16 %v55
    %v225 = vunpack.c.l.b16 %v56
    %v226 = vunpack.c.l.b16 %v57
    %v227 = vunpack.c.l.b16 %v58
    %v228 = vunpack.c.l.b16 %v59
    %v229 = vunpack.c.l.b16 %v60
    %v230 = vunpack.c.l.b16 %v61
    %v231 = vpack.c.b16 %v216, %v215
    %v232 = vpack.c.b16 %v218, %v217
    %v233 = vpack.c.b16 %v220, %v219
    %v234 = vpack.c.b16 %v222, %v221
    %v235 = vpack.c.b16 %v224, %v223
    %v236 = vpack.c.b16 %v226, %v225
    %v237 = vpack.c.b16 %v228, %v227
    %v238 = vpack.c.b16 %v230, %v229
    %247 = vmatprep.subr.bf16.mxu0 0
    %248 = vmatpush1.bf16.msra.mxu0 %v231
    %249 = vmatprep.subr.bf16.mxu0 0
    %250 = vmatpush1.bf16.msra.mxu0 %v232
    %251 = vmatprep.subr.bf16.mxu0 0
    %252 = vmatpush1.bf16.msra.mxu0 %v233
    %253 = vmatprep.subr.bf16.mxu0 0
    %254 = vmatpush1.bf16.msra.mxu0 %v234
    %255 = vmatprep.subr.bf16.mxu0 0
    %256 = vmatpush1.bf16.msra.mxu0 %v235
    %257 = vmatprep.subr.bf16.mxu0 0
    %258 = vmatpush1.bf16.msra.mxu0 %v236
    %259 = vmatprep.subr.bf16.mxu0 0
    %260 = vmatpush1.bf16.msra.mxu0 %v237
    %261 = vmatprep.subr.bf16.mxu0 0
    %262 = vmatpush1.bf16.msra.mxu0 %v238
    %263 = vmatprep.subr.bf16.mxu0 0
    %264 = vmatpush1.bf16.msra.mxu0 0
    %265 = vmatprep.subr.bf16.mxu0 0
    %266 = vmatpush1.bf16.msra.mxu0 0
    %267 = vmatprep.subr.bf16.mxu0 0
    %268 = vmatpush1.bf16.msra.mxu0 0
    %269 = vmatprep.subr.bf16.mxu0 0
    %270 = vmatpush1.bf16.msra.mxu0 0
    %271 = vmatprep.subr.bf16.mxu0 0
    %272 = vmatpush1.bf16.msra.mxu0 0
    %273 = vmatprep.subr.bf16.mxu0 0
    %274 = vmatpush1.bf16.msra.mxu0 0
    %275 = vmatprep.subr.bf16.mxu0 0
    %276 = vmatpush1.bf16.msra.mxu0 0
    %277 = vmatprep.subr.bf16.mxu0 0
    %278 = vmatpush1.bf16.msra.mxu0 0
    %279 = vmatprep.mubr.bf16.mxu0 0
    %280 = vmatmul.mubr.bf16.gmra.mrb[0].mxu0 %v198
    %v281 = vpop.f32.mrb[0].mxu0
    %v282 = vadd.f32 0.0, %v281
    %v283 = vpop.f32.mrb[0].mxu0
    %v284 = vpop.f32.mrb[0].mxu0
    %v285 = vpop.f32.mrb[0].mxu0
    %286 = vdwg.mxu0
    %v287 = vrot.slane %v282, 4
    %v288 = vadd.f32 %v282, %v287
    %v289 = vrot.slane %v288, 2
    %v290 = vadd.f32 %v288, %v289
    %v291 = vrot.slane %v290, 1
    %v292 = vadd.f32 %v290, %v291
    %v293 = vmul.f32 %v292, %v173
    %v294 = vsub.f32 %v282, %v293
    %v295 = vmul.f32 %v294, %v294
    %v296 = vrot.slane %v295, 4
    %v297 = vadd.f32 %v295, %v296
    %v298 = vrot.slane %v297, 2
    %v299 = vadd.f32 %v297, %v298
    %v300 = vrot.slane %v299, 1
    %v301 = vadd.f32 %v299, %v300
    %v302 = vmul.f32 %v301, %v173
    %v303 = vadd.f32 %v302, 1e-05
    %v304 = vrsqrt.pop %v303
    %v305 = vmul.f32 %v27, %v304
    %v306 = vlaneseq
    %v307 = vshrl.u32 %v306, 7
    %v308 = vsub.s32 2, %v307
    %v309 = vrot.slane %v305, %v308
    %v310 = vmul.f32 %v294, %v309
    %v311 = vlaneseq
    %v312 = vshrl.u32 %v311, 7
    %v313 = vsub.s32 3, %v312
    %v314 = vrot.slane %v27, %v313
    %v315 = vadd.f32 %v310, %v314
    %v316 = vmax.f32 %v315, 0.0
    %v317 = vpack.c.bf16 %v316, %v316
    %v318 = vlaneseq
    %v319 = vshrl.u32 %v318, 7
    %v320 = vsub.s32 6, %v319
    %v321 = vrot.slane %v27, %v320
    %v338 = vunpack.c.l.b16 %v62
    %v339 = vunpack.c.l.b16 %v63
    %v340 = vunpack.c.l.b16 %v64
    %v341 = vunpack.c.l.b16 %v65
    %v342 = vunpack.c.l.b16 %v66
    %v343 = vunpack.c.l.b16 %v67
    %v344 = vunpack.c.l.b16 %v68
    %v345 = vunpack.c.l.b16 %v69
    %v346 = vunpack.c.l.b16 %v70
    %v347 = vunpack.c.l.b16 %v71
    %v348 = vunpack.c.l.b16 %v72
    %v349 = vunpack.c.l.b16 %v73
    %v350 = vunpack.c.l.b16 %v74
    %v351 = vunpack.c.l.b16 %v75
    %v352 = vunpack.c.l.b16 %v76
    %v353 = vunpack.c.l.b16 %v77
    %v354 = vpack.c.b16 %v339, %v338
    %v355 = vpack.c.b16 %v341, %v340
    %v356 = vpack.c.b16 %v343, %v342
    %v357 = vpack.c.b16 %v345, %v344
    %v358 = vpack.c.b16 %v347, %v346
    %v359 = vpack.c.b16 %v349, %v348
    %v360 = vpack.c.b16 %v351, %v350
    %v361 = vpack.c.b16 %v353, %v352
    %370 = vmatprep.subr.bf16.mxu0 0
    %371 = vmatpush1.bf16.msra.mxu0 %v354
    %372 = vmatprep.subr.bf16.mxu0 0
    %373 = vmatpush1.bf16.msra.mxu0 %v355
    %374 = vmatprep.subr.bf16.mxu0 0
    %375 = vmatpush1.bf16.msra.mxu0 %v356
    %376 = vmatprep.subr.bf16.mxu0 0
    %377 = vmatpush1.bf16.msra.mxu0 %v357
    %378 = vmatprep.subr.bf16.mxu0 0
    %379 = vmatpush1.bf16.msra.mxu0 %v358
    %380 = vmatprep.subr.bf16.mxu0 0
    %381 = vmatpush1.bf16.msra.mxu0 %v359
    %382 = vmatprep.subr.bf16.mxu0 0
    %383 = vmatpush1.bf16.msra.mxu0 %v360
    %384 = vmatprep.subr.bf16.mxu0 0
    %385 = vmatpush1.bf16.msra.mxu0 %v361
    %386 = vmatprep.subr.bf16.mxu0 0
    %387 = vmatpush1.bf16.msra.mxu0 0
    %388 = vmatprep.subr.bf16.mxu0 0
    %389 = vmatpush1.bf16.msra.mxu0 0
    %390 = vmatprep.subr.bf16.mxu0 0
    %391 = vmatpush1.bf16.msra.mxu0 0
    %392 = vmatprep.subr.bf16.mxu0 0
    %393 = vmatpush1.bf16.msra.mxu0 0
    %394 = vmatprep.subr.bf16.mxu0 0
    %395 = vmatpush1.bf16.msra.mxu0 0
    %396 = vmatprep.subr.bf16.mxu0 0
    %397 = vmatpush1.bf16.msra.mxu0 0
    %398 = vmatprep.subr.bf16.mxu0 0
    %399 = vmatpush1.bf16.msra.mxu0 0
    %400 = vmatprep.subr.bf16.mxu0 0
    %401 = vmatpush1.bf16.msra.mxu0 0
    %402 = vmatprep.mubr.bf16.mxu0 0
    %403 = vmatmul.mubr.bf16.gmra.mrb[0].mxu0 %v317
    %v404 = vpop.f32.mrb[0].mxu0
    %v405 = vadd.f32 %v321, %v404
    %v406 = vpop.f32.mrb[0].mxu0
    %v407 = vpop.f32.mrb[0].mxu0
    %v408 = vpop.f32.mrb[0].mxu0
    %409 = vdwg.mxu0
    %v410 = vrot.slane %v405, 4
    %v411 = vadd.f32 %v405, %v410
    %v412 = vrot.slane %v411, 2
    %v413 = vadd.f32 %v411, %v412
    %v414 = vrot.slane %v413, 1
    %v415 = vadd.f32 %v413, %v414
    %v416 = vmul.f32 %v415, %v173
    %v417 = vsub.f32 %v405, %v416
    %v418 = vmul.f32 %v417, %v417
    %v419 = vrot.slane %v418, 4
    %v420 = vadd.f32 %v418, %v419
    %v421 = vrot.slane %v420, 2
    %v422 = vadd.f32 %v420, %v421
    %v423 = vrot.slane %v422, 1
    %v424 = vadd.f32 %v422, %v423
    %v425 = vmul.f32 %v424, %v173
    %v426 = vadd.f32 %v425, 1e-05
    %v427 = vrsqrt.pop %v426
    %v428 = vmul.f32 %v27, %v427
    %v429 = vlaneseq
    %v430 = vshrl.u32 %v429, 7
    %v431 = vsub.s32 4, %v430
    %v432 = vrot.slane %v428, %v431
    %v433 = vmul.f32 %v417, %v432
    %v434 = vlaneseq
    %v435 = vshrl.u32 %v434, 7
    %v436 = vsub.s32 5, %v435
    %v437 = vrot.slane %v27, %v436
    %v438 = vadd.f32 %v433, %v437
    %v439 = vtanh.pop %v438
    %v440 = vxor.u32 %v405, 2147483648
    %v441 = vmul.f32 %v440, 1.442695
    %v442 = vpow.pop %v441
    %v443 = vadd.f32 %v442, 1.0
    %v444 = vrcp.pop %v443
    %v445 = vmul.f32 1.0, %v444
    %vm446 = vcmp.lt.f32.partialorder %v29, %v445
    %v447 = vsel %vm446, 1, 0
    %v448 = vcvt.s32.f32 %v447
    %v449 = vlaneseq
    %v450 = vand.u32 %v449, 127
    %vm451 = vcmp.lt.s32.totalorder %v450, 3
    %v452 = vsel %vm451, %v439, %v448
    %453 = vst [vmem:[#allocation5] sm:$0xff] %v452
    // Predicated region
    $region14: #{actor_forward.1} parent=1 // pred_check
      _
    $region15: #{actor_forward.1} parent=1 // pred_check_branch
      %455 = sbr.rel (0) target = $region17
    $region16: #{actor_forward.1} parent=1 // pred_region
      %s457 = ssub.s32 128, 128
      %458 = vsyncadd [#allocation4], %s457
      %s460 = sshll.u32 [#allocation5], 4
      %s461 = int_to_ptr.vmem [resolvable:$true] %s460
      %463 = dma.vmem_to_hbm [thread:$0]  %s461, 128, %s2, [#allocation4]
    $region17: #{actor_forward.1} parent=1 // pred_fallthru
      _
    // Predicated region
    $region18: #{actor_forward.1} parent=1 // pred_check
      _
    $region19: #{actor_forward.1} parent=1 // pred_check_branch
      %465 = sbr.rel (0) target = $region21
    $region20: #{actor_forward.1} parent=1 // pred_region
      %466 = dma.done [#allocation4], 128
    $region21: #{actor_forward.1} parent=1 // pred_fallthru
      _
    %467 = vsyncpa [#allocation3], 1
    %468 = vsyncpa [#allocation4], 1

</llo_original>
